<compile_context>
chip_gen: v6e
topology: v6e:2x2x1
jax: 0.10.0
libtpu: 0.0.40
codegen_flags: <defaults>
</compile_context>

<pallas_src>
import jax
import jax.numpy as jnp
import numpy as np
from jax.experimental import pallas as pl
from jax.experimental.pallas import tpu as pltpu


# ---------------------------------------------------------------------------
# Kernel
# ---------------------------------------------------------------------------
def st_embed_kernel(f_ref, idx_ref, w1_ref, w2_ref, bias_ref, o_ref):
    f = f_ref[...]                         # [TR, K]    flattened (L*C) features
    idx = idx_ref[...]                     # [TR, 2]    (tid, 288 + diw) int32
    tr = f.shape[0]
    t = w2_ref.shape[0]                    # 296 = 288 + 7 + 1 pad row

    # One combined one-hot over the concatenated (tid | diw) table rows.
    col = jax.lax.broadcasted_iota(jnp.int32, (tr, t), 1)
    onehot = jnp.logical_or(col == idx[:, 0:1],
                            col == idx[:, 1:2]).astype(jnp.float32)   # [TR, 296]

    # Fused matmuls: conv part (K-deep) + embedding-lookup part (296-deep),
    # both producing the full 4E = 128-lane output width, plus per-node bias
    # (conv bias + node embedding).
    acc = jnp.dot(f, w1_ref[...], preferred_element_type=jnp.float32)        # [TR, 4E]
    acc = acc + jnp.dot(onehot, w2_ref[...], preferred_element_type=jnp.float32)
    o_ref[...] = acc + bias_ref[...]


# ---------------------------------------------------------------------------
# One-time parameter fusion (do NOT rebuild per forward call)
# ---------------------------------------------------------------------------
TID_ROWS = 288
DIW_ROWS = 7
TAB_ROWS = 296    # 288 + 7, padded up to a multiple of 8 (sublane alignment)


def fuse_params(params):
    W = params["conv_w"]                  # [E, K]  (1x1 Conv2d weight, squeezed)
    b = params["conv_b"]                  # [E]
    node_emb = params["node_emb"]         # [N, E]
    tid_tab = params["time_in_day_emb"]   # [288, E]
    diw_tab = params["day_in_week_emb"]   # [7, E]
    E, K = W.shape
    N = node_emb.shape[0]
    Eo = 4 * E

    # Conv weight -> output cols 0:E, zeros elsewhere.
    w_conv = jnp.zeros((K, Eo), jnp.float32).at[:, :E].set(W.T.astype(jnp.float32))
    # Embedding tables -> output cols 2E:3E (tid) and 3E:4E (diw); extra padding
    # rows stay zero (never selected by the one-hot).
    w_tab = jnp.zeros((TAB_ROWS, Eo), jnp.float32)
    w_tab = w_tab.at[:TID_ROWS, 2 * E:3 * E].set(tid_tab.astype(jnp.float32))
    w_tab = w_tab.at[TID_ROWS:TID_ROWS + DIW_ROWS, 3 * E:4 * E].set(
        diw_tab.astype(jnp.float32))
    # Per-node bias: conv bias in cols 0:E, node embedding in cols E:2E.
    bias_node = jnp.zeros((N, Eo), jnp.float32)
    bias_node = bias_node.at[:, :E].set(
        jnp.broadcast_to(b.astype(jnp.float32)[None, :], (N, E)))
    bias_node = bias_node.at[:, E:2 * E].set(node_emb.astype(jnp.float32))

    return dict(w_conv=w_conv, w_tab=w_tab, bias_node=bias_node)


def _pick_batch_block(B, N, target_rows=512):
    """Pick a batch block b so that the row block TR = b*N
    (a) divides B*N evenly (b divides B),
    (b) is sublane-aligned (TR % 8 == 0) unless it spans the whole array, and
    (c) is as close as possible to ~target_rows rows per grid step."""
    best, best_score = B, None            # b == B (full array) is always legal
    for b in range(1, B + 1):
        if B % b:
            continue
        rows = b * N
        if rows % 8 != 0 and b != B:
            continue
        score = abs(rows - target_rows)
        if best_score is None or score < best_score:
            best, best_score = b, score
    return best


# ---------------------------------------------------------------------------
# Forward wrapper
# ---------------------------------------------------------------------------
def spatial_temporal_embedding(x, fused, *, input_dim=3):
    """x: [B, L, N, C] (torch layout).  Returns [B, 4E, N, 1] like the module."""
    B, L, N, _ = x.shape
    w_conv = fused["w_conv"]          # [K, 4E]
    w_tab = fused["w_tab"]            # [296, 4E]
    bias_node = fused["bias_node"]    # [N, 4E]
    K, Eo = w_conv.shape
    T = w_tab.shape[0]
    assert K == input_dim * L
    assert bias_node.shape[0] == N

    # Glue (XLA): flattened conv input [B*N, L*input_dim] and combined indices.
    feats = jnp.transpose(x[..., :input_dim], (0, 2, 1, 3)).reshape(B * N, K)
    tid_idx = jnp.clip((x[:, -1, :, 1] * 288.0).astype(jnp.int32), 0, TID_ROWS - 1)
    diw_idx = jnp.clip(x[:, -1, :, 2].astype(jnp.int32), 0, DIW_ROWS - 1)
    idx = jnp.stack([tid_idx, TID_ROWS + diw_idx], axis=-1).reshape(B * N, 2)

    R = B * N
    b_blk = _pick_batch_block(B, N)
    TR = b_blk * N
    # Row blocks start at multiples of N, so one tiled bias block serves every
    # grid step (stays resident: index_map -> (0, 0)).
    bias = jnp.tile(bias_node, (b_blk, 1))                                    # [TR, 4E]

    out = pl.pallas_call(
        st_embed_kernel,
        out_shape=jax.ShapeDtypeStruct((R, Eo), jnp.float32),
        grid_spec=pltpu.PrefetchScalarGridSpec(
            num_scalar_prefetch=0,
            grid=(R // TR,),
            in_specs=[
                pl.BlockSpec((TR, K), lambda i: (i, 0)),    # features
                pl.BlockSpec((TR, 2), lambda i: (i, 0)),    # combined indices
                pl.BlockSpec((K, Eo), lambda i: (0, 0)),    # fused conv weight (resident)
                pl.BlockSpec((T, Eo), lambda i: (0, 0)),    # fused emb tables  (resident)
                pl.BlockSpec((TR, Eo), lambda i: (0, 0)),   # per-node bias     (resident)
            ],
            out_specs=pl.BlockSpec((TR, Eo), lambda i: (i, 0)),
        ),
        compiler_params=pltpu.CompilerParams(dimension_semantics=("parallel",)),
    )(feats, idx, w_conv, w_tab, bias)

    # [B*N, 4E] -> [B, 4E, N, 1]  (matches torch output layout)
    h = out.reshape(B, N, Eo)
    return jnp.transpose(h, (0, 2, 1))[..., None]


# ---------------------------------------------------------------------------
# Params / reference
# ---------------------------------------------------------------------------
def init_params(key, *, num_nodes, edim=32, input_dim=3, input_len=12):
    k1, k2, k3, k4, k5 = jax.random.split(key, 5)

    def xavier(k, shape):
        bound = float(np.sqrt(6.0 / (shape[0] + shape[1])))
        return jax.random.uniform(k, shape, jnp.float32, -bound, bound)

    K = input_dim * input_len
    wb = float(1.0 / np.sqrt(K))  # Conv2d default bound
    return dict(
        node_emb=xavier(k1, (num_nodes, edim)),
        time_in_day_emb=xavier(k2, (288, edim)),
        day_in_week_emb=xavier(k3, (7, edim)),
        conv_w=jax.random.uniform(k4, (edim, K), jnp.float32, -wb, wb),
        conv_b=jax.random.uniform(k5, (edim,), jnp.float32, -wb, wb),
    )


def reference(x, params, input_dim=3):
    """Pure-JAX reference mirroring the PyTorch forward."""
    B, L, N, _ = x.shape
    feats = jnp.transpose(x[..., :input_dim], (0, 2, 1, 3)).reshape(B, N, -1)
    ts = feats @ params["conv_w"].T + params["conv_b"]                 # [B, N, E]
    tid = params["time_in_day_emb"][(x[:, -1, :, 1] * 288).astype(jnp.int32)]
    diw = params["day_in_week_emb"][x[:, -1, :, 2].astype(jnp.int32)]
    node = jnp.broadcast_to(params["node_emb"][None],
                            (B, N, params["node_emb"].shape[1]))
    h = jnp.concatenate([ts, node, tid, diw], axis=-1)                 # [B, N, 4E]
    return jnp.transpose(h, (0, 2, 1))[..., None]                      # [B, 4E, N, 1]


if __name__ == "__main__":
    key = jax.random.PRNGKey(0)
    kx, kt, kd, kp = jax.random.split(key, 4)

    B, L, N, Cin, E = 2, 12, 16, 3, 32
    vals = jax.random.normal(kx, (B, L, N, 1), jnp.float32)
    tod = jax.random.uniform(kt, (B, L, N, 1), jnp.float32, 0.0, 0.999)   # time-in-day in [0,1)
    dow = jax.random.randint(kd, (B, L, N, 1), 0, 7).astype(jnp.float32)  # day-in-week in [0,7)
    x = jnp.concatenate([vals, tod, dow], axis=-1)                        # [B, L, N, 3]

    params = init_params(kp, num_nodes=N, edim=E, input_dim=Cin, input_len=L)
    fused = fuse_params(params)   # built once, outside the per-call path

    out = spatial_temporal_embedding(x, fused, input_dim=Cin)
    out = jax.block_until_ready(out)

    ref = reference(x, params, input_dim=Cin)
    assert out.shape == (B, 4 * E, N, 1), out.shape
    np.testing.assert_allclose(np.asarray(out), np.asarray(ref), rtol=1e-5, atol=1e-5)
    print("KERNEL_OK")
</pallas_src>

<mosaic_0001>
module attributes {stable_mosaic.version = 11 : i64} {
  func.func @st_embed_kernel(%arg0: i32, %arg1: memref<32x36xf32, #tpu.memory_space<vmem>>, %arg2: memref<32x2xi32, #tpu.memory_space<vmem>>, %arg3: memref<36x128xf32, #tpu.memory_space<vmem>>, %arg4: memref<296x128xf32, #tpu.memory_space<vmem>>, %arg5: memref<32x128xf32, #tpu.memory_space<vmem>>, %arg6: memref<32x128xf32, #tpu.memory_space<vmem>>) attributes {dimension_semantics = [#tpu.dimension_semantics<parallel>], iteration_bounds = array<i64: 1>, scalar_prefetch = 0 : i64, scratch_operands = 0 : i64, tpu.core_type = #tpu.core_type<tc>, window_params = [{transform_indices = @transform_0, window_bounds = array<i64: 32, 36>}, {transform_indices = @transform_1, window_bounds = array<i64: 32, 2>}, {pipeline_mode = #tpu.pipeline_mode<synchronous>, transform_indices = @transform_2, window_bounds = array<i64: 36, 128>}, {pipeline_mode = #tpu.pipeline_mode<synchronous>, transform_indices = @transform_3, window_bounds = array<i64: 296, 128>}, {pipeline_mode = #tpu.pipeline_mode<synchronous>, transform_indices = @transform_4, window_bounds = array<i64: 32, 128>}, {transform_indices = @transform_5, window_bounds = array<i64: 32, 128>}]} {
    %c0 = arith.constant 0 : index
    %c0_0 = arith.constant 0 : index
    %0 = vector.load %arg1[%c0, %c0_0] : memref<32x36xf32, #tpu.memory_space<vmem>>, vector<32x36xf32>
    %c0_1 = arith.constant 0 : index
    %c0_2 = arith.constant 0 : index
    %1 = vector.load %arg2[%c0_1, %c0_2] : memref<32x2xi32, #tpu.memory_space<vmem>>, vector<32x2xi32>
    %2 = tpu.iota {dimensions = array<i32: 1>} : vector<32x296xi32>
    %3 = vector.extract_strided_slice %1 {offsets = [0, 0], sizes = [32, 1], strides = [1, 1]} : vector<32x2xi32> to vector<32x1xi32>
    %4 = vector.broadcast %3 : vector<32x1xi32> to vector<32x296xi32>
    %5 = arith.cmpi eq, %2, %4 : vector<32x296xi32>
    %6 = vector.extract_strided_slice %1 {offsets = [0, 1], sizes = [32, 1], strides = [1, 1]} : vector<32x2xi32> to vector<32x1xi32>
    %7 = vector.broadcast %6 : vector<32x1xi32> to vector<32x296xi32>
    %8 = arith.cmpi eq, %2, %7 : vector<32x296xi32>
    %9 = arith.ori %5, %8 : vector<32x296xi1>
    %10 = arith.extui %9 : vector<32x296xi1> to vector<32x296xi32>
    %11 = arith.sitofp %10 : vector<32x296xi32> to vector<32x296xf32>
    %c0_3 = arith.constant 0 : index
    %c0_4 = arith.constant 0 : index
    %12 = vector.load %arg3[%c0_3, %c0_4] : memref<36x128xf32, #tpu.memory_space<vmem>>, vector<36x128xf32>
    %cst = arith.constant dense<0.000000e+00> : vector<32x128xf32>
    %13 = tpu.matmul %0, %12, %cst {dimension_numbers = #tpu.dot_dimension_numbers<[1], [0], [0], [1], [0, 0, 1, 1], [], []>} : vector<32x36xf32>, vector<36x128xf32>, vector<32x128xf32> -> vector<32x128xf32>
    %c0_5 = arith.constant 0 : index
    %c0_6 = arith.constant 0 : index
    %14 = vector.load %arg4[%c0_5, %c0_6] : memref<296x128xf32, #tpu.memory_space<vmem>>, vector<296x128xf32>
    %cst_7 = arith.constant dense<0.000000e+00> : vector<32x128xf32>
    %15 = tpu.matmul %11, %14, %cst_7 {dimension_numbers = #tpu.dot_dimension_numbers<[1], [0], [0], [1], [0, 0, 1, 1], [], []>} : vector<32x296xf32>, vector<296x128xf32>, vector<32x128xf32> -> vector<32x128xf32>
    %16 = arith.addf %13, %15 : vector<32x128xf32>
    %c0_8 = arith.constant 0 : index
    %c0_9 = arith.constant 0 : index
    %17 = vector.load %arg5[%c0_8, %c0_9] : memref<32x128xf32, #tpu.memory_space<vmem>>, vector<32x128xf32>
    %18 = arith.addf %16, %17 : vector<32x128xf32>
    %c0_10 = arith.constant 0 : index
    %c0_11 = arith.constant 0 : index
    %19 = vector.load %arg6[%c0_10, %c0_11] : memref<32x128xf32, #tpu.memory_space<vmem>>, vector<32x128xf32>
    tpu.vector_store %arg6[%c0_10, %c0_11], %18 {strides = array<i32>} : memref<32x128xf32, #tpu.memory_space<vmem>>, vector<32x128xf32>,
    return
  }
  func.func @transform_0(%arg0: i32) -> (i32, i32) {
    %c0_i32 = arith.constant 0 : i32
    %c0_i32_0 = arith.constant 0 : i32
    return %arg0, %c0_i32 : i32, i32
  }
  func.func @transform_1(%arg0: i32) -> (i32, i32) {
    %c0_i32 = arith.constant 0 : i32
    %c0_i32_0 = arith.constant 0 : i32
    return %arg0, %c0_i32 : i32, i32
  }
  func.func @transform_2(%arg0: i32) -> (i32, i32) {
    %c0_i32 = arith.constant 0 : i32
    %c0_i32_0 = arith.constant 0 : i32
    %c0_i32_1 = arith.constant 0 : i32
    return %c0_i32, %c0_i32_0 : i32, i32
  }
  func.func @transform_3(%arg0: i32) -> (i32, i32) {
    %c0_i32 = arith.constant 0 : i32
    %c0_i32_0 = arith.constant 0 : i32
    %c0_i32_1 = arith.constant 0 : i32
    return %c0_i32, %c0_i32_0 : i32, i32
  }
  func.func @transform_4(%arg0: i32) -> (i32, i32) {
    %c0_i32 = arith.constant 0 : i32
    %c0_i32_0 = arith.constant 0 : i32
    %c0_i32_1 = arith.constant 0 : i32
    return %c0_i32, %c0_i32_0 : i32, i32
  }
  func.func @transform_5(%arg0: i32) -> (i32, i32) {
    %c0_i32 = arith.constant 0 : i32
    %c0_i32_0 = arith.constant 0 : i32
    return %arg0, %c0_i32 : i32, i32
  }
}

</mosaic_0001>

<llo_original>
// kernel: tpu_custom_call.1
$region0: #{tpu_custom_call.1}
  #allocation0 [shape = 'u32[]', space=smem, size = 0x4, offset = 0x4, fixed_abs, tag = 'smem constant byte address 0x4 - core index']
  #allocation1 [shape = 'u32[144,128]{1,0:T(1,128)}', space=vmem, size = 0x12000, scoped, tag = 'internal scratch']
  %s0 = inlined_call_operand.vmem [shape: f32[32,36], index: 0, kind: input, shape index: {}]
  %s1 = inlined_call_operand.vmem [shape: s32[32,2], index: 1, kind: input, shape index: {}]
  %s2 = inlined_call_operand.hbm [shape: f32[36,128], index: 2, kind: input, shape index: {}]
  %s3 = inlined_call_operand.hbm [shape: f32[296,128], index: 3, kind: input, shape index: {}]
  %s4 = inlined_call_operand.hbm [shape: f32[32,128], index: 4, kind: input, shape index: {}]
  %s5 = inlined_call_operand.hbm [shape: f32[32,128], index: 5, kind: output, shape index: {}]
  %s6 = sld [smem:[#allocation0]]
  $region42: #{tpu_custom_call.1} parent=0
    _
  %s8 = ssub.s32 1, %s6
  %s9 = scalar_select 0, %s8, %s6
  $region1: #{tpu_custom_call.1} parent=0
    #allocation2 [shape = 'u8[20480]{0}', space=vmem, size = 0x5000, scoped, tag = 'input window, operand 2, single buffered']
    #allocation3 [shape = 's32[1]{0}', space=sflag, size = 0x4, scoped, tag = 'scoped memory for tpu_custom_call.1']
    #allocation4 [shape = 's32[1]{0}', space=sflag, size = 0x4, scoped, tag = 'scoped memory for tpu_custom_call.1']
    #allocation5 [shape = 'u8[151552]{0}', space=vmem, size = 0x25000, scoped, tag = 'input window, operand 3, single buffered']
    #allocation6 [shape = 's32[1]{0}', space=sflag, size = 0x4, scoped, tag = 'scoped memory for tpu_custom_call.1']
    #allocation7 [shape = 'u8[16384]{0}', space=vmem, size = 0x4000, scoped, tag = 'input window, operand 4, single buffered']
    #allocation8 [shape = 'u8[16384]{0}', space=vmem, size = 0x4000, scoped, tag = 'output window, operand 0, single buffered']
    %10 = vsyncpa [#allocation3], 0
    %11 = vsyncpa [#allocation6], 0
    %12 = vsyncpa [#allocation4], 0
    // Predicated region
    $region2: #{tpu_custom_call.1} parent=1 // pred_check
      _
    $region3: #{tpu_custom_call.1} parent=1 // pred_check_branch
      %14 = sbr.rel (0) target = $region5
    $region4: #{tpu_custom_call.1} parent=1 // pred_region
      _
    $region5: #{tpu_custom_call.1} parent=1 // pred_fallthru
      _
    // Predicated region
    $region6: #{tpu_custom_call.1} parent=1 // pred_check
      _
    $region7: #{tpu_custom_call.1} parent=1 // pred_check_branch
      %16 = sbr.rel (0) target = $region9
    $region8: #{tpu_custom_call.1} parent=1 // pred_region
      _
    $region9: #{tpu_custom_call.1} parent=1 // pred_fallthru
      _
    // Predicated region
    $region10: #{tpu_custom_call.1} parent=1 // pred_check
      _
    $region11: #{tpu_custom_call.1} parent=1 // pred_check_branch
      %18 = sbr.rel (0) target = $region13
    $region12: #{tpu_custom_call.1} parent=1 // pred_region
      %s20 = ssub.s32 640, 640
      %21 = vsyncadd [#allocation3], %s20
      %s22 = sshll.u32 [#allocation2], 4
      %s23 = int_to_ptr.vmem [resolvable:$true] %s22
      %28 = dma.hbm_to_vmem [thread:$0]  %s2, 640, %s23, [#allocation3], 128, 128, 8
    $region13: #{tpu_custom_call.1} parent=1 // pred_fallthru
      _
    // Predicated region
    $region14: #{tpu_custom_call.1} parent=1 // pred_check
      _
    $region15: #{tpu_custom_call.1} parent=1 // pred_check_branch
      %30 = sbr.rel (0) target = $region17
    $region16: #{tpu_custom_call.1} parent=1 // pred_region
      %s32 = ssub.s32 4736, 4736
      %33 = vsyncadd [#allocation6], %s32
      %s34 = sshll.u32 [#allocation5], 4
      %s35 = int_to_ptr.vmem [resolvable:$true] %s34
      %40 = dma.hbm_to_vmem [thread:$0]  %s3, 4736, %s35, [#allocation6], 128, 128, 8
    $region17: #{tpu_custom_call.1} parent=1 // pred_fallthru
      _
    // Predicated region
    $region18: #{tpu_custom_call.1} parent=1 // pred_check
      _
    $region19: #{tpu_custom_call.1} parent=1 // pred_check_branch
      %42 = sbr.rel (0) target = $region21
    $region20: #{tpu_custom_call.1} parent=1 // pred_region
      %s44 = ssub.s32 512, 512
      %45 = vsyncadd [#allocation6], %s44
      %s46 = sshll.u32 [#allocation7], 4
      %s47 = int_to_ptr.vmem [resolvable:$true] %s46
      %52 = dma.hbm_to_vmem [thread:$0]  %s4, 512, %s47, [#allocation6], 128, 128, 8
    $region21: #{tpu_custom_call.1} parent=1 // pred_fallthru
      _
    // Predicated region
    $region22: #{tpu_custom_call.1} parent=1 // pred_check
      _
    $region23: #{tpu_custom_call.1} parent=1 // pred_check_branch
      %54 = sbr.rel (0) target = $region25
    $region24: #{tpu_custom_call.1} parent=1 // pred_region
      %55 = dma.done [#allocation3], 640
    $region25: #{tpu_custom_call.1} parent=1 // pred_fallthru
      _
    // Predicated region
    $region26: #{tpu_custom_call.1} parent=1 // pred_check
      _
    $region27: #{tpu_custom_call.1} parent=1 // pred_check_branch
      %57 = sbr.rel (0) target = $region29
    $region28: #{tpu_custom_call.1} parent=1 // pred_region
      %58 = dma.done [#allocation6], 4736
    $region29: #{tpu_custom_call.1} parent=1 // pred_fallthru
      _
    // Predicated region
    $region30: #{tpu_custom_call.1} parent=1 // pred_check
      _
    $region31: #{tpu_custom_call.1} parent=1 // pred_check_branch
      %60 = sbr.rel (0) target = $region33
    $region32: #{tpu_custom_call.1} parent=1 // pred_region
      %61 = dma.done [#allocation6], 512
    $region33: #{tpu_custom_call.1} parent=1 // pred_fallthru
      _
    %v62 = vld [vmem:[%s0] sm:$0xff]
    %v63 = vld [vmem:[%s0 + $0x8] sm:$0xff]
    %v64 = vld [vmem:[%s0 + $0x10] sm:$0xff]
    %v65 = vld [vmem:[%s0 + $0x18] sm:$0xff]
    %v66 = vld [vmem:[%s1] sm:$0xff]
    %v67 = vld [vmem:[%s1 + $0x8] sm:$0xff]
    %v68 = vld [vmem:[%s1 + $0x10] sm:$0xff]
    %v69 = vld [vmem:[%s1 + $0x18] sm:$0xff]
    %v70 = vlaneseq
    %v71 = vand.u32 %v70, 127
    %v72 = vadd.s32 %v71, 128
    %v73 = vadd.s32 %v71, 256
    %74 = vset.pattern.permute.xlu0 0
    %75 = vperm.xlu0 %74, %v66
    %v76 = vpop.permute.xlu0 %75
    %77 = vset.pattern.permute.xlu0 0
    %78 = vperm.xlu0 %77, %v67
    %v79 = vpop.permute.xlu0 %78
    %80 = vset.pattern.permute.xlu0 0
    %81 = vperm.xlu0 %80, %v68
    %v82 = vpop.permute.xlu0 %81
    %83 = vset.pattern.permute.xlu0 0
    %84 = vperm.xlu0 %83, %v69
    %v85 = vpop.permute.xlu0 %84
    %vm86 = vcmp.eq.s32.totalorder %v71, %v76
    %vm87 = vcmp.eq.s32.totalorder %v72, %v76
    %vm88 = vcmp.eq.s32.totalorder %v73, %v76
    %vm89 = vcmp.eq.s32.totalorder %v71, %v79
    %vm90 = vcmp.eq.s32.totalorder %v72, %v79
    %vm91 = vcmp.eq.s32.totalorder %v73, %v79
    %vm92 = vcmp.eq.s32.totalorder %v71, %v82
    %vm93 = vcmp.eq.s32.totalorder %v72, %v82
    %vm94 = vcmp.eq.s32.totalorder %v73, %v82
    %vm95 = vcmp.eq.s32.totalorder %v71, %v85
    %vm96 = vcmp.eq.s32.totalorder %v72, %v85
    %vm97 = vcmp.eq.s32.totalorder %v73, %v85
    %98 = vset.pattern.permute.xlu0 1
    %99 = vperm.xlu0 %98, %v66
    %v100 = vpop.permute.xlu0 %99
    %101 = vset.pattern.permute.xlu0 1
    %102 = vperm.xlu0 %101, %v67
    %v103 = vpop.permute.xlu0 %102
    %104 = vset.pattern.permute.xlu0 1
    %105 = vperm.xlu0 %104, %v68
    %v106 = vpop.permute.xlu0 %105
    %107 = vset.pattern.permute.xlu0 1
    %108 = vperm.xlu0 %107, %v69
    %v109 = vpop.permute.xlu0 %108
    %vm110 = vcmp.eq.s32.totalorder %v71, %v100
    %vm111 = vcmp.eq.s32.totalorder %v72, %v100
    %vm112 = vcmp.eq.s32.totalorder %v73, %v100
    %vm113 = vcmp.eq.s32.totalorder %v71, %v103
    %vm114 = vcmp.eq.s32.totalorder %v72, %v103
    %vm115 = vcmp.eq.s32.totalorder %v73, %v103
    %vm116 = vcmp.eq.s32.totalorder %v71, %v106
    %vm117 = vcmp.eq.s32.totalorder %v72, %v106
    %vm118 = vcmp.eq.s32.totalorder %v73, %v106
    %vm119 = vcmp.eq.s32.totalorder %v71, %v109
    %vm120 = vcmp.eq.s32.totalorder %v72, %v109
    %vm121 = vcmp.eq.s32.totalorder %v73, %v109
    %vm122 = vmor %vm86, %vm110
    %vm123 = vmor %vm87, %vm111
    %vm124 = vmor %vm88, %vm112
    %vm125 = vmor %vm89, %vm113
    %vm126 = vmor %vm90, %vm114
    %vm127 = vmor %vm91, %vm115
    %vm128 = vmor %vm92, %vm116
    %vm129 = vmor %vm93, %vm117
    %vm130 = vmor %vm94, %vm118
    %vm131 = vmor %vm95, %vm119
    %vm132 = vmor %vm96, %vm120
    %vm133 = vmor %vm97, %vm121
    %v134 = vsel %vm122, 1, 0
    %v135 = vsel %vm123, 1, 0
    %v136 = vsel %vm124, 1, 0
    %v137 = vsel %vm125, 1, 0
    %v138 = vsel %vm126, 1, 0
    %v139 = vsel %vm127, 1, 0
    %v140 = vsel %vm128, 1, 0
    %v141 = vsel %vm129, 1, 0
    %v142 = vsel %vm130, 1, 0
    %v143 = vsel %vm131, 1, 0
    %v144 = vsel %vm132, 1, 0
    %v145 = vsel %vm133, 1, 0
    %v146 = vcvt.s32.f32 %v134
    %v147 = vcvt.s32.f32 %v135
    %v148 = vcvt.s32.f32 %v136
    %v149 = vcvt.s32.f32 %v137
    %v150 = vcvt.s32.f32 %v138
    %v151 = vcvt.s32.f32 %v139
    %v152 = vcvt.s32.f32 %v140
    %v153 = vcvt.s32.f32 %v141
    %v154 = vcvt.s32.f32 %v142
    %v155 = vcvt.s32.f32 %v143
    %v156 = vcvt.s32.f32 %v144
    %v157 = vcvt.s32.f32 %v145
    %v158 = vld [vmem:[#allocation2] sm:$0xff]
    %v159 = vld [vmem:[#allocation2 + $0x8] sm:$0xff]
    %v160 = vld [vmem:[#allocation2 + $0x10] sm:$0xff]
    %v161 = vld [vmem:[#allocation2 + $0x18] sm:$0xff]
    %v162 = vld [vmem:[#allocation2 + $0x20] sm:$0xf]
    %v163 = vld [vmem:[#allocation5] sm:$0xff]
    %v164 = vld [vmem:[#allocation5 + $0x8] sm:$0xff]
    %v165 = vld [vmem:[#allocation5 + $0x10] sm:$0xff]
    %v166 = vld [vmem:[#allocation5 + $0x18] sm:$0xff]
    %v167 = vld [vmem:[#allocation5 + $0x20] sm:$0xff]
    %v168 = vld [vmem:[#allocation5 + $0x28] sm:$0xff]
    %v169 = vld [vmem:[#allocation5 + $0x30] sm:$0xff]
    %v170 = vld [vmem:[#allocation5 + $0x38] sm:$0xff]
    %v171 = vld [vmem:[#allocation5 + $0x40] sm:$0xff]
    %v172 = vld [vmem:[#allocation5 + $0x48] sm:$0xff]
    %v173 = vld [vmem:[#allocation5 + $0x50] sm:$0xff]
    %v174 = vld [vmem:[#allocation5 + $0x58] sm:$0xff]
    %v175 = vld [vmem:[#allocation5 + $0x60] sm:$0xff]
    %v176 = vld [vmem:[#allocation5 + $0x68] sm:$0xff]
    %v177 = vld [vmem:[#allocation5 + $0x70] sm:$0xff]
    %v178 = vld [vmem:[#allocation5 + $0x78] sm:$0xff]
    %v179 = vld [vmem:[#allocation5 + $0x80] sm:$0xff]
    %v180 = vld [vmem:[#allocation5 + $0x88] sm:$0xff]
    %v181 = vld [vmem:[#allocation5 + $0x90] sm:$0xff]
    %v182 = vld [vmem:[#allocation5 + $0x98] sm:$0xff]
    %v183 = vld [vmem:[#allocation5 + $0xa0] sm:$0xff]
    %v184 = vld [vmem:[#allocation5 + $0xa8] sm:$0xff]
    %v185 = vld [vmem:[#allocation5 + $0xb0] sm:$0xff]
    %v186 = vld [vmem:[#allocation5 + $0xb8] sm:$0xff]
    %v187 = vld [vmem:[#allocation5 + $0xc0] sm:$0xff]
    %v188 = vld [vmem:[#allocation5 + $0xc8] sm:$0xff]
    %v189 = vld [vmem:[#allocation5 + $0xd0] sm:$0xff]
    %v190 = vld [vmem:[#allocation5 + $0xd8] sm:$0xff]
    %v191 = vld [vmem:[#allocation5 + $0xe0] sm:$0xff]
    %v192 = vld [vmem:[#allocation5 + $0xe8] sm:$0xff]
    %v193 = vld [vmem:[#allocation5 + $0xf0] sm:$0xff]
    %v194 = vld [vmem:[#allocation5 + $0xf8] sm:$0xff]
    %v195 = vld [vmem:[#allocation5 + $0x100] sm:$0xff]
    %v196 = vld [vmem:[#allocation5 + $0x108] sm:$0xff]
    %v197 = vld [vmem:[#allocation5 + $0x110] sm:$0xff]
    %v198 = vld [vmem:[#allocation5 + $0x118] sm:$0xff]
    %v199 = vld [vmem:[#allocation5 + $0x120] sm:$0xff]
    %vm200 = vcmask 326656
    %v202 = vsel %vm200, %v148, 0
    %v205 = vsel %vm200, %v151, 0
    %v208 = vsel %vm200, %v154, 0
    %v211 = vsel %vm200, %v157, 0
    %213 = vmatprep.subr.mxu0 0.0
    %214 = vmatpush1.msra.mxu0 %v178
    %215 = vmatprep.subr.mxu0 0.0
    %216 = vmatpush1.msra.mxu0 %v177
    %217 = vmatprep.subr.mxu0 0.0
    %218 = vmatpush1.msra.mxu0 %v176
    %219 = vmatprep.subr.mxu0 0.0
    %220 = vmatpush1.msra.mxu0 %v175
    %221 = vmatprep.subr.mxu0 0.0
    %222 = vmatpush1.msra.mxu0 %v174
    %223 = vmatprep.subr.mxu0 0.0
    %224 = vmatpush1.msra.mxu0 %v173
    %225 = vmatprep.subr.mxu0 0.0
    %226 = vmatpush1.msra.mxu0 %v172
    %227 = vmatprep.subr.mxu0 0.0
    %228 = vmatpush1.msra.mxu0 %v171
    %229 = vmatprep.subr.mxu0 0.0
    %230 = vmatpush1.msra.mxu0 %v170
    %231 = vmatprep.subr.mxu0 0.0
    %232 = vmatpush1.msra.mxu0 %v169
    %233 = vmatprep.subr.mxu0 0.0
    %234 = vmatpush1.msra.mxu0 %v168
    %235 = vmatprep.subr.mxu0 0.0
    %236 = vmatpush1.msra.mxu0 %v167
    %237 = vmatprep.subr.mxu0 0.0
    %238 = vmatpush1.msra.mxu0 %v166
    %239 = vmatprep.subr.mxu0 0.0
    %240 = vmatpush1.msra.mxu0 %v165
    %241 = vmatprep.subr.mxu0 0.0
    %242 = vmatpush1.msra.mxu0 %v164
    %243 = vmatprep.subr.mxu0 0.0
    %244 = vmatpush1.msra.mxu0 %v163
    %245 = vmatprep.subr.mxu0 0.0
    %246 = vmatpush2.msra.mxu0 %v194
    %247 = vmatprep.subr.mxu0 0.0
    %248 = vmatpush2.msra.mxu0 %v193
    %249 = vmatprep.subr.mxu0 0.0
    %250 = vmatpush2.msra.mxu0 %v192
    %251 = vmatprep.subr.mxu0 0.0
    %252 = vmatpush2.msra.mxu0 %v191
    %253 = vmatprep.subr.mxu0 0.0
    %254 = vmatpush2.msra.mxu0 %v190
    %255 = vmatprep.subr.mxu0 0.0
    %256 = vmatpush2.msra.mxu0 %v189
    %257 = vmatprep.subr.mxu0 0.0
    %258 = vmatpush2.msra.mxu0 %v188
    %259 = vmatprep.subr.mxu0 0.0
    %260 = vmatpush2.msra.mxu0 %v187
    %261 = vmatprep.subr.mxu0 0.0
    %262 = vmatpush2.msra.mxu0 %v186
    %263 = vmatprep.subr.mxu0 0.0
    %264 = vmatpush2.msra.mxu0 %v185
    %265 = vmatprep.subr.mxu0 0.0
    %266 = vmatpush2.msra.mxu0 %v184
    %267 = vmatprep.subr.mxu0 0.0
    %268 = vmatpush2.msra.mxu0 %v183
    %269 = vmatprep.subr.mxu0 0.0
    %270 = vmatpush2.msra.mxu0 %v182
    %271 = vmatprep.subr.mxu0 0.0
    %272 = vmatpush2.msra.mxu0 %v181
    %273 = vmatprep.subr.mxu0 0.0
    %274 = vmatpush2.msra.mxu0 %v180
    %275 = vmatprep.subr.mxu0 0.0
    %276 = vmatpush2.msra.mxu0 %v179
    %277 = vmatprep.mubr.f32.mxu0 %v147
    %278 = vmatmul.mubr.f32.gmra.mxu0 %v146
    %v279 = vpop.f32.mrf.mxu0
    %v280 = vadd.f32 0.0, %v279
    %v281 = vpop.f32.mrf.mxu0
    %282 = vmatprep.mubr.f32.mxu0 %v150
    %283 = vmatmul.mubr.f32.gmra.mxu0 %v149
    %v284 = vpop.f32.mrf.mxu0
    %v285 = vadd.f32 0.0, %v284
    %v286 = vpop.f32.mrf.mxu0
    %287 = vmatprep.mubr.f32.mxu0 %v153
    %288 = vmatmul.mubr.f32.gmra.mxu0 %v152
    %v289 = vpop.f32.mrf.mxu0
    %v290 = vadd.f32 0.0, %v289
    %v291 = vpop.f32.mrf.mxu0
    %292 = vmatprep.mubr.f32.mxu0 %v156
    %293 = vmatmul.mubr.f32.gmra.mxu0 %v155
    %v294 = vpop.f32.mrf.mxu0
    %v295 = vadd.f32 0.0, %v294
    %v296 = vpop.f32.mrf.mxu0
    %297 = vdwg.mxu0
    %298 = vmatprep.subr.mxu0 0.0
    %299 = vmatpush1.msra.mxu0 0.0
    %300 = vmatprep.subr.mxu0 0.0
    %301 = vmatpush1.msra.mxu0 0.0
    %302 = vmatprep.subr.mxu0 0.0
    %303 = vmatpush1.msra.mxu0 0.0
    %304 = vmatprep.subr.mxu0 0.0
    %305 = vmatpush1.msra.mxu0 0.0
    %306 = vmatprep.subr.mxu0 0.0
    %307 = vmatpush1.msra.mxu0 0.0
    %308 = vmatprep.subr.mxu0 0.0
    %309 = vmatpush1.msra.mxu0 0.0
    %310 = vmatprep.subr.mxu0 0.0
    %311 = vmatpush1.msra.mxu0 0.0
    %312 = vmatprep.subr.mxu0 0.0
    %313 = vmatpush1.msra.mxu0 0.0
    %314 = vmatprep.subr.mxu0 0.0
    %315 = vmatpush1.msra.mxu0 0.0
    %316 = vmatprep.subr.mxu0 0.0
    %317 = vmatpush1.msra.mxu0 0.0
    %318 = vmatprep.subr.mxu0 0.0
    %319 = vmatpush1.msra.mxu0 0.0
    %320 = vmatprep.subr.mxu0 0.0
    %321 = vmatpush1.msra.mxu0 %v199
    %322 = vmatprep.subr.mxu0 0.0
    %323 = vmatpush1.msra.mxu0 %v198
    %324 = vmatprep.subr.mxu0 0.0
    %325 = vmatpush1.msra.mxu0 %v197
    %326 = vmatprep.subr.mxu0 0.0
    %327 = vmatpush1.msra.mxu0 %v196
    %328 = vmatprep.subr.mxu0 0.0
    %329 = vmatpush1.msra.mxu0 %v195
    %330 = vmatprep.subr.mxu0 0.0
    %331 = vmatpush2.msra.mxu0 0.0
    %332 = vmatprep.subr.mxu0 0.0
    %333 = vmatpush2.msra.mxu0 0.0
    %334 = vmatprep.subr.mxu0 0.0
    %335 = vmatpush2.msra.mxu0 0.0
    %336 = vmatprep.subr.mxu0 0.0
    %337 = vmatpush2.msra.mxu0 0.0
    %338 = vmatprep.subr.mxu0 0.0
    %339 = vmatpush2.msra.mxu0 0.0
    %340 = vmatprep.subr.mxu0 0.0
    %341 = vmatpush2.msra.mxu0 0.0
    %342 = vmatprep.subr.mxu0 0.0
    %343 = vmatpush2.msra.mxu0 0.0
    %344 = vmatprep.subr.mxu0 0.0
    %345 = vmatpush2.msra.mxu0 0.0
    %346 = vmatprep.subr.mxu0 0.0
    %347 = vmatpush2.msra.mxu0 0.0
    %348 = vmatprep.subr.mxu0 0.0
    %349 = vmatpush2.msra.mxu0 0.0
    %350 = vmatprep.subr.mxu0 0.0
    %351 = vmatpush2.msra.mxu0 0.0
    %352 = vmatprep.subr.mxu0 0.0
    %353 = vmatpush2.msra.mxu0 0.0
    %354 = vmatprep.subr.mxu0 0.0
    %355 = vmatpush2.msra.mxu0 0.0
    %356 = vmatprep.subr.mxu0 0.0
    %357 = vmatpush2.msra.mxu0 0.0
    %358 = vmatprep.subr.mxu0 0.0
    %359 = vmatpush2.msra.mxu0 0.0
    %360 = vmatprep.subr.mxu0 0.0
    %361 = vmatpush2.msra.mxu0 0.0
    %362 = vmatprep.mubr.f32.mxu0 0.0
    %363 = vmatmul.mubr.f32.gmra.mxu0 %v202
    %v364 = vpop.f32.mrf.mxu0
    %v365 = vadd.f32 %v280, %v364
    %v366 = vpop.f32.mrf.mxu0
    %367 = vmatprep.mubr.f32.mxu0 0.0
    %368 = vmatmul.mubr.f32.gmra.mxu0 %v205
    %v369 = vpop.f32.mrf.mxu0
    %v370 = vadd.f32 %v285, %v369
    %v371 = vpop.f32.mrf.mxu0
    %372 = vmatprep.mubr.f32.mxu0 0.0
    %373 = vmatmul.mubr.f32.gmra.mxu0 %v208
    %v374 = vpop.f32.mrf.mxu0
    %v375 = vadd.f32 %v290, %v374
    %v376 = vpop.f32.mrf.mxu0
    %377 = vmatprep.mubr.f32.mxu0 0.0
    %378 = vmatmul.mubr.f32.gmra.mxu0 %v211
    %v379 = vpop.f32.mrf.mxu0
    %v380 = vadd.f32 %v295, %v379
    %v381 = vpop.f32.mrf.mxu0
    %382 = vdwg.mxu0
    %vm383 = vcmask 293888
    %v385 = vsel %vm383, %v62, 0
    %v388 = vsel %vm383, %v63, 0
    %v391 = vsel %vm383, %v64, 0
    %v394 = vsel %vm383, %v65, 0
    %vm396 = vcmask 1043456
    %v398 = vsel %vm396, %v162, 0
    %400 = vmatprep.subr.mxu0 0.0
    %401 = vmatpush1.msra.mxu0 0.0
    %402 = vmatprep.subr.mxu0 0.0
    %403 = vmatpush1.msra.mxu0 0.0
    %404 = vmatprep.subr.mxu0 0.0
    %405 = vmatpush1.msra.mxu0 0.0
    %406 = vmatprep.subr.mxu0 0.0
    %407 = vmatpush1.msra.mxu0 0.0
    %408 = vmatprep.subr.mxu0 0.0
    %409 = vmatpush1.msra.mxu0 0.0
    %410 = vmatprep.subr.mxu0 0.0
    %411 = vmatpush1.msra.mxu0 0.0
    %412 = vmatprep.subr.mxu0 0.0
    %413 = vmatpush1.msra.mxu0 0.0
    %414 = vmatprep.subr.mxu0 0.0
    %415 = vmatpush1.msra.mxu0 0.0
    %416 = vmatprep.subr.mxu0 0.0
    %417 = vmatpush1.msra.mxu0 0.0
    %418 = vmatprep.subr.mxu0 0.0
    %419 = vmatpush1.msra.mxu0 0.0
    %420 = vmatprep.subr.mxu0 0.0
    %421 = vmatpush1.msra.mxu0 0.0
    %422 = vmatprep.subr.mxu0 0.0
    %423 = vmatpush1.msra.mxu0 %v398
    %424 = vmatprep.subr.mxu0 0.0
    %425 = vmatpush1.msra.mxu0 %v161
    %426 = vmatprep.subr.mxu0 0.0
    %427 = vmatpush1.msra.mxu0 %v160
    %428 = vmatprep.subr.mxu0 0.0
    %429 = vmatpush1.msra.mxu0 %v159
    %430 = vmatprep.subr.mxu0 0.0
    %431 = vmatpush1.msra.mxu0 %v158
    %432 = vmatprep.subr.mxu0 0.0
    %433 = vmatpush2.msra.mxu0 0.0
    %434 = vmatprep.subr.mxu0 0.0
    %435 = vmatpush2.msra.mxu0 0.0
    %436 = vmatprep.subr.mxu0 0.0
    %437 = vmatpush2.msra.mxu0 0.0
    %438 = vmatprep.subr.mxu0 0.0
    %439 = vmatpush2.msra.mxu0 0.0
    %440 = vmatprep.subr.mxu0 0.0
    %441 = vmatpush2.msra.mxu0 0.0
    %442 = vmatprep.subr.mxu0 0.0
    %443 = vmatpush2.msra.mxu0 0.0
    %444 = vmatprep.subr.mxu0 0.0
    %445 = vmatpush2.msra.mxu0 0.0
    %446 = vmatprep.subr.mxu0 0.0
    %447 = vmatpush2.msra.mxu0 0.0
    %448 = vmatprep.subr.mxu0 0.0
    %449 = vmatpush2.msra.mxu0 0.0
    %450 = vmatprep.subr.mxu0 0.0
    %451 = vmatpush2.msra.mxu0 0.0
    %452 = vmatprep.subr.mxu0 0.0
    %453 = vmatpush2.msra.mxu0 0.0
    %454 = vmatprep.subr.mxu0 0.0
    %455 = vmatpush2.msra.mxu0 0.0
    %456 = vmatprep.subr.mxu0 0.0
    %457 = vmatpush2.msra.mxu0 0.0
    %458 = vmatprep.subr.mxu0 0.0
    %459 = vmatpush2.msra.mxu0 0.0
    %460 = vmatprep.subr.mxu0 0.0
    %461 = vmatpush2.msra.mxu0 0.0
    %462 = vmatprep.subr.mxu0 0.0
    %463 = vmatpush2.msra.mxu0 0.0
    %464 = vmatprep.mubr.f32.mxu0 0.0
    %465 = vmatmul.mubr.f32.gmra.mxu0 %v385
    %v466 = vpop.f32.mrf.mxu0
    %v467 = vadd.f32 %v365, %v466
    %v468 = vpop.f32.mrf.mxu0
    %469 = vmatprep.mubr.f32.mxu0 0.0
    %470 = vmatmul.mubr.f32.gmra.mxu0 %v388
    %v471 = vpop.f32.mrf.mxu0
    %v472 = vadd.f32 %v370, %v471
    %v473 = vpop.f32.mrf.mxu0
    %474 = vmatprep.mubr.f32.mxu0 0.0
    %475 = vmatmul.mubr.f32.gmra.mxu0 %v391
    %v476 = vpop.f32.mrf.mxu0
    %v477 = vadd.f32 %v375, %v476
    %v478 = vpop.f32.mrf.mxu0
    %479 = vmatprep.mubr.f32.mxu0 0.0
    %480 = vmatmul.mubr.f32.gmra.mxu0 %v394
    %v481 = vpop.f32.mrf.mxu0
    %v482 = vadd.f32 %v380, %v481
    %v483 = vpop.f32.mrf.mxu0
    %484 = vdwg.mxu0
    %v485 = vld [vmem:[#allocation7] sm:$0xff]
    %v486 = vld [vmem:[#allocation7 + $0x8] sm:$0xff]
    %v487 = vld [vmem:[#allocation7 + $0x10] sm:$0xff]
    %v488 = vld [vmem:[#allocation7 + $0x18] sm:$0xff]
    %v489 = vadd.f32 %v467, %v485
    %v490 = vadd.f32 %v472, %v486
    %v491 = vadd.f32 %v477, %v487
    %v492 = vadd.f32 %v482, %v488
    %493 = vst [vmem:[#allocation8] sm:$0xff] %v489
    %494 = vst [vmem:[#allocation8 + $0x8] sm:$0xff] %v490
    %495 = vst [vmem:[#allocation8 + $0x10] sm:$0xff] %v491
    %496 = vst [vmem:[#allocation8 + $0x18] sm:$0xff] %v492
    // Predicated region
    $region34: #{tpu_custom_call.1} parent=1 // pred_check
      _
    $region35: #{tpu_custom_call.1} parent=1 // pred_check_branch
      %498 = sbr.rel (0) target = $region37
    $region36: #{tpu_custom_call.1} parent=1 // pred_region
      %s500 = ssub.s32 512, 512
      %501 = vsyncadd [#allocation4], %s500
      %s502 = sshll.u32 [#allocation8], 4
      %s503 = int_to_ptr.vmem [resolvable:$true] %s502
      %508 = dma.vmem_to_hbm [thread:$0]  %s503, 512, %s5, [#allocation4], 128, 128, 8
    $region37: #{tpu_custom_call.1} parent=1 // pred_fallthru
      _
    // Predicated region
    $region38: #{tpu_custom_call.1} parent=1 // pred_check
      _
    $region39: #{tpu_custom_call.1} parent=1 // pred_check_branch
      %510 = sbr.rel (0) target = $region41
    $region40: #{tpu_custom_call.1} parent=1 // pred_region
      %511 = dma.done [#allocation4], 512
    $region41: #{tpu_custom_call.1} parent=1 // pred_fallthru
      _
    %512 = vsyncpa [#allocation3], 1
    %513 = vsyncpa [#allocation6], 1
    %514 = vsyncpa [#allocation4], 1

</llo_original>
